<compile_context>
chip_gen: v7x
topology: tpu7x:2x2x1
jax: 0.10.0
libtpu: 0.0.40
codegen_flags: <defaults>
</compile_context>

<pallas_src>
import jax
import jax.numpy as jnp
from jax.experimental import pallas as pl
from jax.experimental.pallas import tpu as pltpu


def _conv1x1_tile(x, w, b):
    """1x1 conv on one tile, channels on sublanes / pixels on lanes.

    x: (C_in, T) f32, w: (C_out, C_in) f32, b: (C_out, 1) f32 -> (C_out, T) f32.
    K = C_in is tiny, so use C_in unrolled broadcast multiply-adds on the VPU
    instead of paying MXU push/pop latency for trivial FLOPs.
    """
    c_out, c_in = w.shape
    t = x.shape[-1]
    acc = jnp.broadcast_to(b, (c_out, t))            # bias (lane broadcast)
    for k in range(c_in):                            # static unroll, C_in small
        acc = acc + w[:, k:k + 1] * x[k:k + 1, :]    # (C_out,1) x (1,T) FMA
    return acc


def _distill_train_kernel(x_ref, w_ref, b_ref, y_ref, part_ref, y1_scr):
    # grid = (b_half, n_tiles, 2); axis 2 selects student (0) / teacher (1).
    s = pl.program_id(2)

    y = _conv1x1_tile(x_ref[0], w_ref[0], b_ref[0])      # (C_out, TILE) f32
    y_ref[0] = y.astype(y_ref.dtype)

    @pl.when(s == 0)
    def _():
        # Stash the student tile; it is consumed at s == 1 for the loss.
        y1_scr[...] = y

    @pl.when(s == 1)
    def _():
        # Per-(batch, tile) partial of ||y1 - y2||^2; summed + sqrt in wrapper.
        d = y1_scr[...] - y
        part_ref[...] = jnp.broadcast_to(jnp.sum(d * d), part_ref.shape)


def _student_eval_kernel(x_ref, w_ref, b_ref, y_ref):
    y_ref[0] = _conv1x1_tile(x_ref[0], w_ref[...], b_ref[...]).astype(y_ref.dtype)


def _pick_tile(hw, cap=8192):
    """Largest multiple-of-128 divisor of hw (capped); else the full extent."""
    if hw % 128 != 0:
        return hw
    best = 128
    for cand in range(128, min(hw, cap) + 1, 128):
        if hw % cand == 0:
            best = cand
    return best


def _run_train(x_flat, w_st, b_st, *, b_half, tile):
    b_total, c_in, hw = x_flat.shape
    c_out = w_st.shape[1]
    n_tiles = hw // tile
    return pl.pallas_call(
        _distill_train_kernel,
        out_shape=(
            jax.ShapeDtypeStruct((b_total, c_out, hw), jnp.float32),
            jax.ShapeDtypeStruct((b_half, n_tiles, 8, 128), jnp.float32),
        ),
        grid=(b_half, n_tiles, 2),
        in_specs=[
            # x: (B, C_in, HW); s=0 -> student half, s=1 -> teacher half.
            pl.BlockSpec((1, c_in, tile), lambda b, t, s: (s * b_half + b, 0, t)),
            # stacked weights (2, C_out, C_in) / biases (2, C_out, 1), picked by s.
            pl.BlockSpec((1, c_out, c_in), lambda b, t, s: (s, 0, 0)),
            pl.BlockSpec((1, c_out, 1), lambda b, t, s: (s, 0, 0)),
        ],
        out_specs=(
            # y written directly into the concatenated (B, C_out, HW) buffer.
            pl.BlockSpec((1, c_out, tile), lambda b, t, s: (s * b_half + b, 0, t)),
            # per-(batch, tile) loss partials; revisited only across the
            # "arbitrary" s axis (written at s == 1).
            pl.BlockSpec((1, 1, 8, 128), lambda b, t, s: (b, t, 0, 0)),
        ),
        scratch_shapes=[pltpu.VMEM((c_out, tile), jnp.float32)],
        compiler_params=pltpu.CompilerParams(
            dimension_semantics=("parallel", "parallel", "arbitrary")),
    )(x_flat, w_st, b_st)


def _run_eval(x_flat, w, b, *, tile):
    b_total, c_in, hw = x_flat.shape
    c_out = w.shape[0]
    n_tiles = hw // tile
    return pl.pallas_call(
        _student_eval_kernel,
        out_shape=jax.ShapeDtypeStruct((b_total, c_out, hw), jnp.float32),
        grid=(b_total, n_tiles),
        in_specs=[
            pl.BlockSpec((1, c_in, tile), lambda i, t: (i, 0, t)),
            pl.BlockSpec((c_out, c_in), lambda i, t: (0, 0)),
            pl.BlockSpec((c_out, 1), lambda i, t: (0, 0)),
        ],
        out_specs=pl.BlockSpec((1, c_out, tile), lambda i, t: (i, 0, t)),
        compiler_params=pltpu.CompilerParams(
            dimension_semantics=("parallel", "parallel")),
    )(x_flat, w, b)


def distill_op_forward(x, ws, bs, wt, bt, *, training=True):
    """x: (B, C_in, H, W) NCHW f32.  Weights ws/wt: (C_in, C_out), biases
    bs/bt: (1, C_out).  Returns (y, loss) in training mode, y in eval mode;
    y is NCHW (B, C_out, H, W)."""
    bsz, c_in, h, wd = x.shape
    c_out = ws.shape[1]
    hw = h * wd
    tile = _pick_tile(hw)

    # Free reshape: NCHW already has H*W contiguous per channel.
    x_flat = x.reshape(bsz, c_in, hw)
    ws_t = jnp.transpose(ws)          # (C_out, C_in), tiny
    wt_t = jnp.transpose(wt)
    bs_c = bs.reshape(c_out, 1)
    bt_c = bt.reshape(c_out, 1)

    if not training:
        y_flat = _run_eval(x_flat, ws_t, bs_c, tile=tile)
        return y_flat.reshape(bsz, c_out, h, wd)

    assert bsz % 2 == 0, "batch size must be even for self distillation."
    b_half = bsz // 2

    w_st = jnp.stack([ws_t, wt_t], axis=0)    # (2, C_out, C_in)
    b_st = jnp.stack([bs_c, bt_c], axis=0)    # (2, C_out, 1)

    y_flat, partials = _run_train(x_flat, w_st, b_st, b_half=b_half, tile=tile)

    y = y_flat.reshape(bsz, c_out, h, wd)              # = concat([y1, y2], 0)
    loss = jnp.sqrt(jnp.sum(partials[:, :, 0, 0]))     # (y1 - y2).norm(2)
    # TODO(synk): backward needs a custom_vjp (pallas_call is not auto-diffable
    # here); the teacher half of y and its contribution to the loss must be
    # treated as detached (torch.no_grad/.detach()) in that VJP.
    return y, loss


if __name__ == "__main__":
    # Small deterministic example: batch=2, C_in=4, H=W=16, C_out=8.
    B, C_IN, H, W = 2, 4, 16, 16
    C_OUT = 8

    key = jax.random.PRNGKey(0)
    kx, kws, kbs, kwt, kbt = jax.random.split(key, 5)

    x = jax.random.normal(kx, (B, C_IN, H, W), dtype=jnp.float32)
    # 1x1-conv weights stored as (C_in, C_out), biases as (1, C_out).
    ws = jax.random.normal(kws, (C_IN, C_OUT), dtype=jnp.float32) * 0.1
    bs = jax.random.normal(kbs, (1, C_OUT), dtype=jnp.float32) * 0.1
    wt = jax.random.normal(kwt, (C_IN, C_OUT), dtype=jnp.float32) * 0.1
    bt = jax.random.normal(kbt, (1, C_OUT), dtype=jnp.float32) * 0.1

    y, loss = distill_op_forward(x, ws, bs, wt, bt, training=True)
    y_eval = distill_op_forward(x, ws, bs, wt, bt, training=False)
    jax.block_until_ready((y, loss, y_eval))

    # Pure-JAX reference check.
    def conv1x1_ref(t, wgt, bias):
        tf = jnp.transpose(t, (0, 2, 3, 1)).reshape(-1, C_IN)
        of = tf @ wgt + bias
        return jnp.transpose(of.reshape(t.shape[0], H, W, C_OUT), (0, 3, 1, 2))

    y1_ref = conv1x1_ref(x[:B // 2], ws, bs)
    y2_ref = conv1x1_ref(x[B // 2:], wt, bt)
    y_ref = jnp.concatenate([y1_ref, y2_ref], axis=0)
    loss_ref = jnp.sqrt(jnp.sum((y1_ref - y2_ref) ** 2))
    y_eval_ref = conv1x1_ref(x, ws, bs)

    assert y.shape == (B, C_OUT, H, W)
    assert jnp.allclose(y, y_ref, atol=2e-5, rtol=1e-5)
    assert jnp.allclose(loss, loss_ref, atol=1e-4, rtol=1e-4)
    assert jnp.allclose(y_eval, y_eval_ref, atol=2e-5, rtol=1e-5)

    print("KERNEL_OK")
</pallas_src>

<mosaic_0001>
module attributes {stable_mosaic.version = 11 : i64} {
  func.func @_distill_train_kernel(%arg0: i32, %arg1: i32, %arg2: i32, %arg3: memref<1x4x256xf32, #tpu.memory_space<vmem>>, %arg4: memref<1x8x4xf32, #tpu.memory_space<vmem>>, %arg5: memref<1x8x1xf32, #tpu.memory_space<vmem>>, %arg6: memref<1x8x256xf32, #tpu.memory_space<vmem>>, %arg7: memref<1x1x8x128xf32, #tpu.memory_space<vmem>>, %arg8: memref<8x256xf32, #tpu.memory_space<vmem>>) attributes {dimension_semantics = [#tpu.dimension_semantics<parallel>, #tpu.dimension_semantics<parallel>, #tpu.dimension_semantics<arbitrary>], iteration_bounds = array<i64: 1, 1, 2>, scalar_prefetch = 0 : i64, scratch_operands = 1 : i64, tpu.core_type = #tpu.core_type<tc>, window_params = [{transform_indices = @transform_0, window_bounds = array<i64: 1, 4, 256>}, {transform_indices = @transform_1, window_bounds = array<i64: 1, 8, 4>}, {transform_indices = @transform_2, window_bounds = array<i64: 1, 8, 1>}, {transform_indices = @transform_3, window_bounds = array<i64: 1, 8, 256>}, {transform_indices = @transform_4, window_bounds = array<i64: 1, 1, 8, 128>}]} {
    %c0 = arith.constant 0 : index
    %c0_0 = arith.constant 0 : index
    %c0_1 = arith.constant 0 : index
    %0 = vector.load %arg3[%c0, %c0_0, %c0_1] : memref<1x4x256xf32, #tpu.memory_space<vmem>>, vector<1x4x256xf32>
    %1 = vector.shape_cast %0 : vector<1x4x256xf32> to vector<4x256xf32>
    %c0_2 = arith.constant 0 : index
    %c0_3 = arith.constant 0 : index
    %c0_4 = arith.constant 0 : index
    %2 = vector.load %arg4[%c0_2, %c0_3, %c0_4] : memref<1x8x4xf32, #tpu.memory_space<vmem>>, vector<1x8x4xf32>
    %3 = vector.shape_cast %2 : vector<1x8x4xf32> to vector<8x4xf32>
    %c0_5 = arith.constant 0 : index
    %c0_6 = arith.constant 0 : index
    %c0_7 = arith.constant 0 : index
    %4 = vector.load %arg5[%c0_5, %c0_6, %c0_7] : memref<1x8x1xf32, #tpu.memory_space<vmem>>, vector<1x8x1xf32>
    %5 = vector.shape_cast %4 : vector<1x8x1xf32> to vector<8x1xf32>
    %6 = vector.shape_cast %5 : vector<8x1xf32> to vector<8x1xf32>
    %7 = vector.broadcast %6 : vector<8x1xf32> to vector<8x256xf32>
    %8 = vector.extract_strided_slice %3 {offsets = [0, 0], sizes = [8, 1], strides = [1, 1]} : vector<8x4xf32> to vector<8x1xf32>
    %9 = vector.extract_strided_slice %1 {offsets = [0, 0], sizes = [1, 256], strides = [1, 1]} : vector<4x256xf32> to vector<1x256xf32>
    %10 = vector.broadcast %8 : vector<8x1xf32> to vector<8x256xf32>
    %11 = vector.broadcast %9 : vector<1x256xf32> to vector<8x256xf32>
    %12 = arith.mulf %10, %11 : vector<8x256xf32>
    %13 = arith.addf %7, %12 : vector<8x256xf32>
    %14 = vector.extract_strided_slice %3 {offsets = [0, 1], sizes = [8, 1], strides = [1, 1]} : vector<8x4xf32> to vector<8x1xf32>
    %15 = vector.extract_strided_slice %1 {offsets = [1, 0], sizes = [1, 256], strides = [1, 1]} : vector<4x256xf32> to vector<1x256xf32>
    %16 = vector.broadcast %14 : vector<8x1xf32> to vector<8x256xf32>
    %17 = vector.broadcast %15 : vector<1x256xf32> to vector<8x256xf32>
    %18 = arith.mulf %16, %17 : vector<8x256xf32>
    %19 = arith.addf %13, %18 : vector<8x256xf32>
    %20 = vector.extract_strided_slice %3 {offsets = [0, 2], sizes = [8, 1], strides = [1, 1]} : vector<8x4xf32> to vector<8x1xf32>
    %21 = vector.extract_strided_slice %1 {offsets = [2, 0], sizes = [1, 256], strides = [1, 1]} : vector<4x256xf32> to vector<1x256xf32>
    %22 = vector.broadcast %20 : vector<8x1xf32> to vector<8x256xf32>
    %23 = vector.broadcast %21 : vector<1x256xf32> to vector<8x256xf32>
    %24 = arith.mulf %22, %23 : vector<8x256xf32>
    %25 = arith.addf %19, %24 : vector<8x256xf32>
    %26 = vector.extract_strided_slice %3 {offsets = [0, 3], sizes = [8, 1], strides = [1, 1]} : vector<8x4xf32> to vector<8x1xf32>
    %27 = vector.extract_strided_slice %1 {offsets = [3, 0], sizes = [1, 256], strides = [1, 1]} : vector<4x256xf32> to vector<1x256xf32>
    %28 = vector.broadcast %26 : vector<8x1xf32> to vector<8x256xf32>
    %29 = vector.broadcast %27 : vector<1x256xf32> to vector<8x256xf32>
    %30 = arith.mulf %28, %29 : vector<8x256xf32>
    %31 = arith.addf %25, %30 : vector<8x256xf32>
    %c0_8 = arith.constant 0 : index
    %c0_9 = arith.constant 0 : index
    %c0_10 = arith.constant 0 : index
    %32 = vector.load %arg6[%c0_8, %c0_9, %c0_10] : memref<1x8x256xf32, #tpu.memory_space<vmem>>, vector<1x8x256xf32>
    %33 = vector.shape_cast %32 : vector<1x8x256xf32> to vector<8x256xf32>
    %34 = vector.shape_cast %31 : vector<8x256xf32> to vector<1x8x256xf32>
    tpu.vector_store %arg6[%c0_8, %c0_9, %c0_10], %34 {strides = array<i32>} : memref<1x8x256xf32, #tpu.memory_space<vmem>>, vector<1x8x256xf32>,
    %c0_i32 = arith.constant 0 : i32
    %35 = arith.cmpi eq, %arg2, %c0_i32 : i32
    %36 = arith.extui %35 : i1 to i32
    %c0_i32_11 = arith.constant 0 : i32
    %37 = arith.cmpi ne, %36, %c0_i32_11 : i32
    scf.if %37 {
      %c0_13 = arith.constant 0 : index
      %c0_14 = arith.constant 0 : index
      %41 = vector.load %arg8[%c0_13, %c0_14] : memref<8x256xf32, #tpu.memory_space<vmem>>, vector<8x256xf32>
      tpu.vector_store %arg8[%c0_13, %c0_14], %31 {strides = array<i32>} : memref<8x256xf32, #tpu.memory_space<vmem>>, vector<8x256xf32>,
    } else {
    }
    %c1_i32 = arith.constant 1 : i32
    %38 = arith.cmpi eq, %arg2, %c1_i32 : i32
    %39 = arith.extui %38 : i1 to i32
    %c0_i32_12 = arith.constant 0 : i32
    %40 = arith.cmpi ne, %39, %c0_i32_12 : i32
    scf.if %40 {
      %c0_13 = arith.constant 0 : index
      %c0_14 = arith.constant 0 : index
      %41 = vector.load %arg8[%c0_13, %c0_14] : memref<8x256xf32, #tpu.memory_space<vmem>>, vector<8x256xf32>
      %42 = arith.subf %41, %31 : vector<8x256xf32>
      %43 = arith.mulf %42, %42 : vector<8x256xf32>
      %44 = vector.shape_cast %43 : vector<8x256xf32> to vector<1x8x256xf32>
      %cst = arith.constant dense<0.000000e+00> : vector<1xf32>
      %45 = vector.multi_reduction <add>, %44, %cst [1, 2] : vector<1x8x256xf32> to vector<1xf32>
      %46 = vector.shape_cast %45 : vector<1xf32> to vector<1x1x1xf32>
      %47 = vector.extract %46[0, 0, 0] : f32 from vector<1x1x1xf32>
      %48 = vector.broadcast %47 : f32 to vector<1x1x8x128xf32>
      %c0_15 = arith.constant 0 : index
      %c0_16 = arith.constant 0 : index
      %c0_17 = arith.constant 0 : index
      %c0_18 = arith.constant 0 : index
      %49 = vector.load %arg7[%c0_15, %c0_16, %c0_17, %c0_18] : memref<1x1x8x128xf32, #tpu.memory_space<vmem>>, vector<1x1x8x128xf32>
      tpu.vector_store %arg7[%c0_15, %c0_16, %c0_17, %c0_18], %48 {strides = array<i32>} : memref<1x1x8x128xf32, #tpu.memory_space<vmem>>, vector<1x1x8x128xf32>,
    } else {
    }
    return
  }
  func.func @transform_0(%arg0: i32, %arg1: i32, %arg2: i32) -> (i32, i32, i32) {
    %c1_i32 = arith.constant 1 : i32
    %0 = arith.muli %arg2, %c1_i32 : i32
    %1 = arith.addi %0, %arg0 : i32
    %c0_i32 = arith.constant 0 : i32
    %c0_i32_0 = arith.constant 0 : i32
    return %1, %c0_i32, %arg1 : i32, i32, i32
  }
  func.func @transform_1(%arg0: i32, %arg1: i32, %arg2: i32) -> (i32, i32, i32) {
    %c0_i32 = arith.constant 0 : i32
    %c0_i32_0 = arith.constant 0 : i32
    %c0_i32_1 = arith.constant 0 : i32
    return %arg2, %c0_i32, %c0_i32_0 : i32, i32, i32
  }
  func.func @transform_2(%arg0: i32, %arg1: i32, %arg2: i32) -> (i32, i32, i32) {
    %c0_i32 = arith.constant 0 : i32
    %c0_i32_0 = arith.constant 0 : i32
    %c0_i32_1 = arith.constant 0 : i32
    return %arg2, %c0_i32, %c0_i32_0 : i32, i32, i32
  }
  func.func @transform_3(%arg0: i32, %arg1: i32, %arg2: i32) -> (i32, i32, i32) {
    %c1_i32 = arith.constant 1 : i32
    %0 = arith.muli %arg2, %c1_i32 : i32
    %1 = arith.addi %0, %arg0 : i32
    %c0_i32 = arith.constant 0 : i32
    %c0_i32_0 = arith.constant 0 : i32
    return %1, %c0_i32, %arg1 : i32, i32, i32
  }
  func.func @transform_4(%arg0: i32, %arg1: i32, %arg2: i32) -> (i32, i32, i32, i32) {
    %c0_i32 = arith.constant 0 : i32
    %c0_i32_0 = arith.constant 0 : i32
    %c0_i32_1 = arith.constant 0 : i32
    return %arg0, %arg1, %c0_i32, %c0_i32_0 : i32, i32, i32, i32
  }
}

</mosaic_0001>

<llo_original>
// kernel: tpu_custom_call.1
$region0: #{tpu_custom_call.1}
  #allocation0 [shape = 'u32[]', space=smem, size = 0x4, offset = 0x4, fixed_abs, tag = 'smem constant byte address 0x4 - core index']
  #allocation1 [shape = 'u32[144,128]{1,0:T(1,128)}', space=vmem, size = 0x12000, scoped, tag = 'internal scratch']
  #allocation2 [shape = 'f32[8,256]{1,0:T(8,128)}', space=vmem, size = 0x2000, scoped, tag = 'scratch operand']
  %s0 = inlined_call_operand.vmem [shape: f32[2,4,256], index: 0, kind: input, shape index: {}]
  %s1 = inlined_call_operand.vmem [shape: f32[2,8,4], index: 1, kind: input, shape index: {}]
  %s2 = inlined_call_operand.vmem [shape: f32[2,8,1], index: 2, kind: input, shape index: {}]
  %s3 = inlined_call_operand.hbm [shape: f32[2,8,256], index: 3, kind: output, shape index: {0}]
  %s4 = inlined_call_operand.hbm [shape: f32[1,1,8,128], index: 4, kind: output, shape index: {1}]
  %5 = xla_tuple %s3, %s4
  %s6 = sld [smem:[#allocation0]]
  $region61: #{tpu_custom_call.1} parent=0
    _
  %s8 = ssub.s32 1, %s6
  %s9 = scalar_select 0, %s8, %s6
  $region1: #{tpu_custom_call.1} parent=0
    #allocation3 [shape = 'u8[16384]{0}', space=vmem, size = 0x4000, scoped, tag = 'output window, operand 0']
    #allocation4 [shape = 's32[2]{0}', space=sflag, size = 0x8, scoped, tag = 'scoped memory for tpu_custom_call.1']
    #allocation5 [shape = 'u8[4096]{0}', space=vmem, size = 0x1000, scoped, tag = 'output window, operand 1, single buffered']
    #allocation6 [shape = 's32[1]{0}', space=sflag, size = 0x4, scoped, tag = 'scoped memory for tpu_custom_call.1']
    %10 = vsyncpa [#allocation4], 0
    %s11 = scalar_lea.sflag [#allocation4], 1
    %12 = vsyncpa %s11, 0
    %13 = vsyncpa [#allocation6], 0
    loop: start=0, step=1, limit=4
    $region2: #{tpu_custom_call.1} parent=1 // loop_pre_header
      _
    $region3: #{tpu_custom_call.1} parent=1 // loop_header
      %s15 = sphi 0, %s19
      %p16 = scmp.ge.s32.totalorder %s15, 4
      %s22 = sphi 0, %s41
      %s23 = sphi 0, %s37
      %s24 = sphi 0, %s33
      %s25 = sphi 0, %s22
      %s26 = sphi 0, %s23
      %s27 = sphi 0, %s24
      %s28 = sphi 0, %s25
      %s29 = sphi 0, %s26
      %s30 = sphi 0, %s27
      %s48 = sphi 0, %s50
      %s51 = sphi 0, %s48
      %s52 = sphi 0, %s51
      %s68 = sphi 0, %s52
      %s74 = sphi 0, %s76
      %s77 = sphi 0, %s74
      %s78 = sphi 0, %s77
      %s94 = sphi 0, %s78
      %s100 = sphi 0, %s102
      %s103 = sphi 0, %s100
      %s104 = sphi 0, %s103
      %s120 = sphi 0, %s104
      %s130 = sphi 0, %s132
      %s133 = sphi 0, %s130
      %s134 = sphi 0, %s133
      %s150 = sphi 0, %s134
      %s158 = sphi 0, %s160
      %s161 = sphi 0, %s158
      %s162 = sphi 0, %s161
      %s178 = sphi 0, %s162
    $region4: #{tpu_custom_call.1} parent=1 // loop_header_branch
      %18 = sbr.rel (%p16) target = $region8
    $region5: #{tpu_custom_call.1} parent=1 // loop_body
      %s20 = ssub.s32 %s15, 1
      %s21 = ssub.s32 %s15, 2
      %s31 = sadd.s32 1, %s24
      %p32 = scmp.ge.s32.totalorder %s31, 2
      %s33 = scalar_select %p32, 0, %s31
      %s34 = sadd.s32 1, %s23
      %s35 = scalar_select %p32, %s34, %s23
      %p36 = scmp.ge.s32.totalorder %s35, 1
      %s37 = scalar_select %p36, 0, %s35
      %s38 = sadd.s32 1, %s22
      %s39 = scalar_select %p36, %s38, %s22
      %p40 = scmp.ge.s32.totalorder %s39, 1
      %s41 = scalar_select %p40, 0, %s39
      %s42 = sadd.s32 %s24, %s22
      %s43 = sadd.s32 %s33, %s41
      %s44 = ssub.s32 %s42, %s43
      %s45 = ssub.s32 %s23, %s37
      %s46 = sor.u32 %s44, %s45
      %p47 = scmp.eq.s32.totalorder %s46, 0
      %s49 = sadd.s32 %s48, 1
      %s50 = scalar_select %p47, %s48, %s49
      %p53 = pneg %p47
      %p54 = scmp.eq.s32.totalorder %s15, 1
      %p55 = por %p53, %p54
      %p56 = scmp.ne.s32.totalorder %s48, %s51
      %p57 = scmp.eq.s32.totalorder %s15, 0
      %p58 = por %p56, %p57
      %p59 = scmp.ne.s32.totalorder %s48, %s51
      %p60 = scmp.eq.s32.totalorder %s20, 1
      %p61 = por %p59, %p60
      %p62 = scmp.ne.s32.totalorder %s51, %s52
      %p63 = scmp.eq.s32.totalorder %s20, 0
      %p64 = por %p62, %p63
      %p65 = scmp.ne.s32.totalorder %s51, %s52
      %p66 = scmp.eq.s32.totalorder %s21, 1
      %p67 = por %p65, %p66
      %p69 = scmp.ne.s32.totalorder %s52, %s68
      %p70 = scmp.eq.s32.totalorder %s21, 0
      %p71 = por %p69, %p70
      %s72 = ssub.s32 %s24, %s33
      %p73 = scmp.eq.s32.totalorder %s72, 0
      %s75 = sadd.s32 %s74, 1
      %s76 = scalar_select %p73, %s74, %s75
      %p79 = pneg %p73
      %p80 = scmp.eq.s32.totalorder %s15, 1
      %p81 = por %p79, %p80
      %p82 = scmp.ne.s32.totalorder %s74, %s77
      %p83 = scmp.eq.s32.totalorder %s15, 0
      %p84 = por %p82, %p83
      %p85 = scmp.ne.s32.totalorder %s74, %s77
      %p86 = scmp.eq.s32.totalorder %s20, 1
      %p87 = por %p85, %p86
      %p88 = scmp.ne.s32.totalorder %s77, %s78
      %p89 = scmp.eq.s32.totalorder %s20, 0
      %p90 = por %p88, %p89
      %p91 = scmp.ne.s32.totalorder %s77, %s78
      %p92 = scmp.eq.s32.totalorder %s21, 1
      %p93 = por %p91, %p92
      %p95 = scmp.ne.s32.totalorder %s78, %s94
      %p96 = scmp.eq.s32.totalorder %s21, 0
      %p97 = por %p95, %p96
      %s98 = ssub.s32 %s24, %s33
      %p99 = scmp.eq.s32.totalorder %s98, 0
      %s101 = sadd.s32 %s100, 1
      %s102 = scalar_select %p99, %s100, %s101
      %p105 = pneg %p99
      %p106 = scmp.eq.s32.totalorder %s15, 1
      %p107 = por %p105, %p106
      %p108 = scmp.ne.s32.totalorder %s100, %s103
      %p109 = scmp.eq.s32.totalorder %s15, 0
      %p110 = por %p108, %p109
      %p111 = scmp.ne.s32.totalorder %s100, %s103
      %p112 = scmp.eq.s32.totalorder %s20, 1
      %p113 = por %p111, %p112
      %p114 = scmp.ne.s32.totalorder %s103, %s104
      %p115 = scmp.eq.s32.totalorder %s20, 0
      %p116 = por %p114, %p115
      %p117 = scmp.ne.s32.totalorder %s103, %s104
      %p118 = scmp.eq.s32.totalorder %s21, 1
      %p119 = por %p117, %p118
      %p121 = scmp.ne.s32.totalorder %s104, %s120
      %p122 = scmp.eq.s32.totalorder %s21, 0
      %p123 = por %p121, %p122
      %s124 = sadd.s32 %s24, %s22
      %s125 = sadd.s32 %s33, %s41
      %s126 = ssub.s32 %s124, %s125
      %s127 = ssub.s32 %s23, %s37
      %s128 = sor.u32 %s126, %s127
      %p129 = scmp.eq.s32.totalorder %s128, 0
      %s131 = sadd.s32 %s130, 1
      %s132 = scalar_select %p129, %s130, %s131
      %p135 = pneg %p129
      %p136 = scmp.eq.s32.totalorder %s15, 1
      %p137 = por %p135, %p136
      %p138 = scmp.ne.s32.totalorder %s130, %s133
      %p139 = scmp.eq.s32.totalorder %s15, 0
      %p140 = por %p138, %p139
      %p141 = scmp.ne.s32.totalorder %s130, %s133
      %p142 = scmp.eq.s32.totalorder %s20, 1
      %p143 = por %p141, %p142
      %p144 = scmp.ne.s32.totalorder %s133, %s134
      %p145 = scmp.eq.s32.totalorder %s20, 0
      %p146 = por %p144, %p145
      %p147 = scmp.ne.s32.totalorder %s133, %s134
      %p148 = scmp.eq.s32.totalorder %s21, 1
      %p149 = por %p147, %p148
      %p151 = scmp.ne.s32.totalorder %s134, %s150
      %p152 = scmp.eq.s32.totalorder %s21, 0
      %p153 = por %p151, %p152
      %s154 = ssub.s32 %s22, %s41
      %s155 = ssub.s32 %s23, %s37
      %s156 = sor.u32 %s154, %s155
      %p157 = scmp.eq.s32.totalorder %s156, 0
      %s159 = sadd.s32 %s158, 1
      %s160 = scalar_select %p157, %s158, %s159
      %p163 = pneg %p157
      %p164 = scmp.eq.s32.totalorder %s15, 1
      %p165 = por %p163, %p164
      %p166 = scmp.ne.s32.totalorder %s158, %s161
      %p167 = scmp.eq.s32.totalorder %s15, 0
      %p168 = por %p166, %p167
      %p169 = scmp.ne.s32.totalorder %s158, %s161
      %p170 = scmp.eq.s32.totalorder %s20, 1
      %p171 = por %p169, %p170
      %p172 = scmp.ne.s32.totalorder %s161, %s162
      %p173 = scmp.eq.s32.totalorder %s20, 0
      %p174 = por %p172, %p173
      %p175 = scmp.ne.s32.totalorder %s161, %s162
      %p176 = scmp.eq.s32.totalorder %s21, 1
      %p177 = por %p175, %p176
      %p179 = scmp.ne.s32.totalorder %s162, %s178
      %p180 = scmp.eq.s32.totalorder %s21, 0
      %p181 = por %p179, %p180
      %p182 = scmp.le.s32.totalorder 1, %s15
      %p183 = scmp.lt.s32.totalorder %s15, 3
      %p184 = pnand %p182, %p183
      %p185 = pneg %p184
      // Predicated region
      $region9: #{tpu_custom_call.1} parent=5 // pred_check
        _
      $region10: #{tpu_custom_call.1} parent=5 // pred_check_branch
        %187 = sbr.rel (%p184) target = $region12
      $region11: #{tpu_custom_call.1} parent=5 // pred_region
        %s188 = ssub.s32 %s15, 1
      $region12: #{tpu_custom_call.1} parent=5 // pred_fallthru
        _
      %p189 = scmp.lt.s32.totalorder %s15, 2
      // Predicated region
      $region13: #{tpu_custom_call.1} parent=5 // pred_check
        %p190 = pneg %p189
      $region14: #{tpu_custom_call.1} parent=5 // pred_check_branch
        %192 = sbr.rel (%p190) target = $region16
      $region15: #{tpu_custom_call.1} parent=5 // pred_region
        // Predicated region
        $region17: #{tpu_custom_call.1} parent=15 // pred_check
          %p193 = pneg %p58
        $region18: #{tpu_custom_call.1} parent=15 // pred_check_branch
          %195 = sbr.rel (%p193) target = $region20
        $region19: #{tpu_custom_call.1} parent=15 // pred_region
          %s196 = sadd.s32 %s24, %s22
          %s197 = smul.u32 2, %s23
          %p198 = scmp.lt.s32.totalorder %s196, 1
          %s199 = scalar_select %p198, %s196, 1
          %p200 = scmp.lt.s32.totalorder %s197, 1
          %s201 = scalar_select %p200, %s197, 1
          %s202 = smul.addr %s199, 2
          %s203 = sadd.s32 %s201, %s202
          %s204 = smul.addr %s203, 4
          %s205 = scalar_lea.vmem %s0, %s204
          %s206 = sadd.s32 %s24, %s22
          %s207 = smul.u32 2, %s23
        $region20: #{tpu_custom_call.1} parent=15 // pred_fallthru
          _
        // Predicated region
        $region21: #{tpu_custom_call.1} parent=15 // pred_check
          %p208 = pneg %p84
        $region22: #{tpu_custom_call.1} parent=15 // pred_check_branch
          %210 = sbr.rel (%p208) target = $region24
        $region23: #{tpu_custom_call.1} parent=15 // pred_region
          %p211 = scmp.lt.s32.totalorder %s24, 1
          %s212 = scalar_select %p211, %s24, 1
          %s213 = smul.addr %s212, 8
          %s214 = scalar_lea.vmem %s1, %s213
        $region24: #{tpu_custom_call.1} parent=15 // pred_fallthru
          _
        // Predicated region
        $region25: #{tpu_custom_call.1} parent=15 // pred_check
          %p215 = pneg %p110
        $region26: #{tpu_custom_call.1} parent=15 // pred_check_branch
          %217 = sbr.rel (%p215) target = $region28
        $region27: #{tpu_custom_call.1} parent=15 // pred_region
          %p218 = scmp.lt.s32.totalorder %s24, 1
          %s219 = scalar_select %p218, %s24, 1
          %s220 = smul.addr %s219, 8
          %s221 = scalar_lea.vmem %s2, %s220
        $region28: #{tpu_custom_call.1} parent=15 // pred_fallthru
          _
      $region16: #{tpu_custom_call.1} parent=5 // pred_fallthru
        _
      %p222 = scmp.le.s32.totalorder 1, %s15
      %p223 = scmp.lt.s32.totalorder %s15, 3
      %p224 = pnand %p222, %p223
      %p225 = pneg %p224
      // Predicated region
      $region29: #{tpu_custom_call.1} parent=5 // pred_check
        _
      $region30: #{tpu_custom_call.1} parent=5 // pred_check_branch
        %227 = sbr.rel (%p224) target = $region32
      $region31: #{tpu_custom_call.1} parent=5 // pred_region
        %s228 = ssub.s32 %s15, 1
        %s229 = sadd.s32 %s27, %s25
        %s230 = smul.u32 2, %s26
        %p231 = scmp.lt.s32.totalorder %s229, 1
        %s232 = scalar_select %p231, %s229, 1
        %p233 = scmp.lt.s32.totalorder %s230, 1
        %s234 = scalar_select %p233, %s230, 1
        %s235 = smul.addr %s232, 2
        %s236 = sadd.s32 %s234, %s235
        %s237 = smul.addr %s236, 4
        %s238 = scalar_lea.vmem %s0, %s237
        %p239 = pneg %p64
        %p240 = pneg %p61
        %p241 = scmp.lt.s32.totalorder %s27, 1
        %s242 = scalar_select %p241, %s27, 1
        %s243 = smul.addr %s242, 8
        %s244 = scalar_lea.vmem %s1, %s243
        %p245 = pneg %p90
        %p246 = pneg %p87
        %p247 = scmp.lt.s32.totalorder %s27, 1
        %s248 = scalar_select %p247, %s27, 1
        %s249 = smul.addr %s248, 8
        %s250 = scalar_lea.vmem %s2, %s249
        %p251 = pneg %p116
        %p252 = pneg %p113
        %p253 = pneg %p146
        %p254 = pneg %p143
        %s255 = sand.u32 %s133, 1
        %s256 = scalar_lea.sflag [#allocation4], %s255
        %s257 = sand.u32 %s133, 1
        %s258 = smul.addr %s257, 16
        %s259 = scalar_lea.vmem [#allocation3], %s258
        %p260 = pneg %p174
        %p261 = pneg %p171
        %s262 = sadd.s32 %s27, %s25
        %s263 = smul.u32 2, %s26
        %p264 = scmp.lt.s32.totalorder %s262, 1
        %s265 = scalar_select %p264, %s262, 1
        %p266 = scmp.lt.s32.totalorder %s263, 1
        %s267 = scalar_select %p266, %s263, 1
        %s268 = smul.addr %s265, 2
        %s269 = sadd.s32 %s267, %s268
        %s270 = smul.addr %s269, 4
        %s271 = scalar_lea.vmem %s0, %s270
        %s272 = sadd.s32 %s27, %s25
        %s273 = smul.u32 2, %s26
        %p274 = scmp.lt.s32.totalorder %s27, 1
        %s275 = scalar_select %p274, %s27, 1
        %s276 = smul.addr %s275, 8
        %s277 = scalar_lea.vmem %s1, %s276
        %p278 = scmp.lt.s32.totalorder %s27, 1
        %s279 = scalar_select %p278, %s27, 1
        %s280 = smul.addr %s279, 8
        %s281 = scalar_lea.vmem %s2, %s280
        %s282 = sadd.s32 %s27, %s25
        %s283 = smul.u32 2, %s26
        %v284 = vld [vmem:[%s271] sm:$0xff]
        %v285 = vld [vmem:[%s277] sm:$0xff]
        %v286 = vld [vmem:[%s281] sm:$0xff]
        %288 = vset.pattern.permute.xlu0 0
        %289 = vperm.xlu0 %288, %v286
        %v290 = vpop.permute.xlu0 %289
        %293 = vset.pattern.permute.xlu0 0
        %294 = vperm.xlu0 %293, %v285
        %v295 = vpop.permute.xlu0 %294
        %v298 = vlaneseq
        %v299 = vshrl.u32 %v298, 7
        %v300 = vsub.s32 0, %v299
        %v301 = vrot.slane %v284, %v300
        %v302 = vlaneseq
        %v303 = vshrl.u32 %v302, 7
        %v304 = vsub.s32 4, %v303
        %v305 = vrot.slane %v284, %v304
        %v308 = vlaneseq
        %v309 = vshrl.u32 %v308, 7
        %v310 = vsub.s32 0, %v309
        %v311 = vrot.slane %v301, %v310
        %v312 = vlaneseq
        %v313 = vshrl.u32 %v312, 7
        %v314 = vsub.s32 0, %v313
        %v315 = vrot.slane %v305, %v314
        %v316 = vmul.f32 %v295, %v311
        %v317 = vmul.f32 %v295, %v315
        %v318 = vadd.f32 %v290, %v316
        %v319 = vadd.f32 %v290, %v317
        %320 = vset.pattern.permute.xlu0 1
        %321 = vperm.xlu0 %320, %v285
        %v322 = vpop.permute.xlu0 %321
        %v324 = vlaneseq
        %v325 = vshrl.u32 %v324, 7
        %v326 = vsub.s32 1, %v325
        %v327 = vrot.slane %v284, %v326
        %v328 = vlaneseq
        %v329 = vshrl.u32 %v328, 7
        %v330 = vsub.s32 5, %v329
        %v331 = vrot.slane %v284, %v330
        %v334 = vlaneseq
        %v335 = vshrl.u32 %v334, 7
        %v336 = vsub.s32 1, %v335
        %v337 = vrot.slane %v327, %v336
        %v338 = vlaneseq
        %v339 = vshrl.u32 %v338, 7
        %v340 = vsub.s32 1, %v339
        %v341 = vrot.slane %v331, %v340
        %v342 = vmul.f32 %v322, %v337
        %v343 = vmul.f32 %v322, %v341
        %v344 = vadd.f32 %v318, %v342
        %v345 = vadd.f32 %v319, %v343
        %346 = vset.pattern.permute.xlu0 2
        %347 = vperm.xlu0 %346, %v285
        %v348 = vpop.permute.xlu0 %347
        %v350 = vlaneseq
        %v351 = vshrl.u32 %v350, 7
        %v352 = vsub.s32 2, %v351
        %v353 = vrot.slane %v284, %v352
        %v354 = vlaneseq
        %v355 = vshrl.u32 %v354, 7
        %v356 = vsub.s32 6, %v355
        %v357 = vrot.slane %v284, %v356
        %v360 = vlaneseq
        %v361 = vshrl.u32 %v360, 7
        %v362 = vsub.s32 2, %v361
        %v363 = vrot.slane %v353, %v362
        %v364 = vlaneseq
        %v365 = vshrl.u32 %v364, 7
        %v366 = vsub.s32 2, %v365
        %v367 = vrot.slane %v357, %v366
        %v368 = vmul.f32 %v348, %v363
        %v369 = vmul.f32 %v348, %v367
        %v370 = vadd.f32 %v344, %v368
        %v371 = vadd.f32 %v345, %v369
        %372 = vset.pattern.permute.xlu0 3
        %373 = vperm.xlu0 %372, %v285
        %v374 = vpop.permute.xlu0 %373
        %v376 = vlaneseq
        %v377 = vshrl.u32 %v376, 7
        %v378 = vsub.s32 3, %v377
        %v379 = vrot.slane %v284, %v378
        %v380 = vlaneseq
        %v381 = vshrl.u32 %v380, 7
        %v382 = vsub.s32 7, %v381
        %v383 = vrot.slane %v284, %v382
        %v386 = vlaneseq
        %v387 = vshrl.u32 %v386, 7
        %v388 = vsub.s32 3, %v387
        %v389 = vrot.slane %v379, %v388
        %v390 = vlaneseq
        %v391 = vshrl.u32 %v390, 7
        %v392 = vsub.s32 3, %v391
        %v393 = vrot.slane %v383, %v392
        %v394 = vmul.f32 %v374, %v389
        %v395 = vmul.f32 %v374, %v393
        %v396 = vadd.f32 %v370, %v394
        %v397 = vadd.f32 %v371, %v395
        %398 = vst [vmem:[%s259] sm:$0xff] %v396
        %399 = vst [vmem:[%s259 + $0x8] sm:$0xff] %v397
        %p400 = scmp.eq.s32.totalorder %s27, 0
        // Predicated region
        $region33: #{tpu_custom_call.1} parent=31 // pred_check
          %p401 = pneg %p400
        $region34: #{tpu_custom_call.1} parent=31 // pred_check_branch
          %403 = sbr.rel (%p401) target = $region36
        $region35: #{tpu_custom_call.1} parent=31 // pred_region
          %404 = vst [vmem:[#allocation2] sm:$0xff] %v396
          %405 = vst [vmem:[#allocation2 + $0x8] sm:$0xff] %v397
        $region36: #{tpu_custom_call.1} parent=31 // pred_fallthru
          _
        %p406 = scmp.eq.s32.totalorder %s27, 1
        // Predicated region
        $region37: #{tpu_custom_call.1} parent=31 // pred_check
          %p407 = pneg %p406
        $region38: #{tpu_custom_call.1} parent=31 // pred_check_branch
          %409 = sbr.rel (%p407) target = $region40
        $region39: #{tpu_custom_call.1} parent=31 // pred_region
          %v410 = vld [vmem:[#allocation2] sm:$0xff]
          %v411 = vld [vmem:[#allocation2 + $0x8] sm:$0xff]
          %v412 = vsub.f32 %v410, %v396
          %v413 = vsub.f32 %v411, %v397
          %v414 = vmul.f32 %v412, %v412
          %v415 = vmul.f32 %v413, %v413
          %v416 = vadd.f32 %v414, %v415
          %417 = vadd.xlane.f32.xlu0 %v416
          %v418 = vpop.xlane.xlu0 %417
          %v419 = vrot.slane %v418, 4
          %v420 = vadd.f32 %v418, %v419
          %v421 = vrot.slane %v420, 2
          %v422 = vadd.f32 %v420, %v421
          %v423 = vrot.slane %v422, 1
          %v424 = vadd.f32 %v422, %v423
          %s425 = vtos %v424
          %v426 = vstv %s425
          %427 = vst [vmem:[#allocation5] sm:$0xff] %v426
        $region40: #{tpu_custom_call.1} parent=31 // pred_fallthru
          _
        %s428 = sand.u32 %s133, 1
        %s429 = scalar_lea.sflag [#allocation4], %s428
        %s430 = sand.u32 %s133, 1
        %s431 = smul.addr %s430, 16
        %s432 = scalar_lea.vmem [#allocation3], %s431
        // Predicated region
        $region41: #{tpu_custom_call.1} parent=31 // pred_check
          %p433 = pneg %p143
        $region42: #{tpu_custom_call.1} parent=31 // pred_check_branch
          %435 = sbr.rel (%p433) target = $region44
        $region43: #{tpu_custom_call.1} parent=31 // pred_region
          %s436 = sadd.s32 %s27, %s25
          %s437 = smul.u32 2, %s26
          %s439 = ssub.s32 256, 256
          %440 = vsyncadd %s429, %s439
          %s441 = smul.addr %s436, 2
          %s442 = sadd.s32 %s437, %s441
          %s443 = smul.addr %s442, 128
          %s444 = scalar_lea.hbm %s3, %s443
          %s446 = sshll.u32 %s432, 4
          %s447 = int_to_ptr.vmem [resolvable:$true] %s446
          %449 = dma.vmem_to_hbm [thread:$0]  %s447, 256, %s444, %s429
        $region44: #{tpu_custom_call.1} parent=31 // pred_fallthru
          _
        // Predicated region
        $region45: #{tpu_custom_call.1} parent=31 // pred_check
          %p450 = pneg %p171
        $region46: #{tpu_custom_call.1} parent=31 // pred_check_branch
          %452 = sbr.rel (%p450) target = $region48
        $region47: #{tpu_custom_call.1} parent=31 // pred_region
          %s454 = ssub.s32 128, 128
          %455 = vsyncadd [#allocation6], %s454
          %s456 = sadd.s32 %s26, %s25
          %s457 = smul.addr %s456, 128
          %s458 = scalar_lea.hbm %s4, %s457
          %s460 = sshll.u32 [#allocation5], 4
          %s461 = int_to_ptr.vmem [resolvable:$true] %s460
          %463 = dma.vmem_to_hbm [thread:$0]  %s461, 128, %s458, [#allocation6]
        $region48: #{tpu_custom_call.1} parent=31 // pred_fallthru
          _
        // Predicated region
        $region49: #{tpu_custom_call.1} parent=31 // pred_check
          %p464 = pneg %p171
        $region50: #{tpu_custom_call.1} parent=31 // pred_check_branch
          %466 = sbr.rel (%p464) target = $region52
        $region51: #{tpu_custom_call.1} parent=31 // pred_region
          %467 = dma.done [#allocation6], 128
        $region52: #{tpu_custom_call.1} parent=31 // pred_fallthru
          _
      $region32: #{tpu_custom_call.1} parent=5 // pred_fallthru
        _
      %p468 = scmp.le.s32.totalorder 2, %s15
      // Predicated region
      $region53: #{tpu_custom_call.1} parent=5 // pred_check
        %p469 = pneg %p468
      $region54: #{tpu_custom_call.1} parent=5 // pred_check_branch
        %471 = sbr.rel (%p469) target = $region56
      $region55: #{tpu_custom_call.1} parent=5 // pred_region
        %s472 = ssub.s32 %s15, 2
        // Predicated region
        $region57: #{tpu_custom_call.1} parent=55 // pred_check
          %p473 = pneg %p149
        $region58: #{tpu_custom_call.1} parent=55 // pred_check_branch
          %475 = sbr.rel (%p473) target = $region60
        $region59: #{tpu_custom_call.1} parent=55 // pred_region
          %s476 = sand.u32 %s134, 1
          %s477 = scalar_lea.sflag [#allocation4], %s476
          %s478 = sand.u32 %s134, 1
          %s479 = smul.addr %s478, 16
          %s480 = scalar_lea.vmem [#allocation3], %s479
          %481 = dma.done %s477, 256
        $region60: #{tpu_custom_call.1} parent=55 // pred_fallthru
          _
      $region56: #{tpu_custom_call.1} parent=5 // pred_fallthru
        _
    $region6: #{tpu_custom_call.1} parent=1 // loop_footer
      %s19 = sadd.s32 1, %s15
    $region7: #{tpu_custom_call.1} parent=1 // loop_footer_branch
      %14 = sbr.rel target = $region3
    $region8: #{tpu_custom_call.1} parent=1 // loop_exit
      _
    %482 = vsyncpa [#allocation4], 1
    %s483 = scalar_lea.sflag [#allocation4], 1
    %484 = vsyncpa %s483, 1
    %485 = vsyncpa [#allocation6], 1

</llo_original>
